<compile_context>
chip_gen: v5e
topology: v5e:2x2
jax: 0.10.0
libtpu: 0.0.40
codegen_flags: <defaults>
</compile_context>

<pallas_src>
import jax
import jax.numpy as jnp
from jax.experimental import pallas as pl
from jax.experimental.pallas import tpu as pltpu

LANE = 128
_WIDTHS = (4096, 2048, 1024, 512, 256, LANE)


def _right_shift_kernel(x_ref, y_ref, o_ref):
    # Arithmetic right shift for signed ints / logical for unsigned ints ==
    # torch.bitwise_right_shift semantics for in-range shift amounts.
    # (Shift counts >= bit-width or negative are undefined in both frameworks.)
    o_ref[...] = jnp.right_shift(x_ref[...], y_ref[...])


def _vmem_budget():
    """Generation-aware (block bytes per operand, vmem_limit_bytes)."""
    try:
        cap = pltpu.get_tpu_info().vmem_capacity_bytes
    except Exception:
        cap = None
    if cap is not None and cap >= (100 << 20):
        # v5e / v6e: 128 MiB physical VMEM -> larger blocks, fewer grid steps.
        # 3 arrays x 2 buffers x 8 MiB = 48 MiB double-buffered + scratch.
        return 8 << 20, 64 << 20
    # v7x (64 MiB physical) or unknown: 3 x 2 x 4 MiB = 24 MiB + scratch.
    return 4 << 20, 40 << 20


def _sublane_multiple(itemsize):
    # Native packed tile: (8,128) for 32-bit, (16,128) 16-bit, (32,128) 8-bit.
    return {1: 32, 2: 16}.get(itemsize, 8)


def _pick_block_rows(rows, width, itemsize, target_bytes):
    sub = _sublane_multiple(itemsize)
    cap_rows = max(sub, ((target_bytes // itemsize) // width // sub) * sub)
    total_bytes = rows * width * itemsize

    if cap_rows >= rows:
        # Whole slab fits in one block. For inputs big enough to matter, force
        # >= 2 grid steps so both v7x TensorCores stream (parallel grid axis).
        if total_bytes > (1 << 20) and rows >= 2 * sub:
            half = -(-((rows + 1) // 2) // sub) * sub
            return min(half, rows)
        return rows

    # Prefer a block_rows that divides rows evenly (no masked partial trailing
    # block), as long as it shrinks the block by less than 2x.
    r = cap_rows
    while r >= sub:
        if rows % r == 0:
            if 2 * r >= cap_rows:
                return r
            break
        r -= sub
    return cap_rows


def bitwise_right_shift(x, y):
    """Elementwise x >> y via a Pallas TPU kernel. x, y same shape, int dtype."""
    assert x.shape == y.shape, "module applies an elementwise op on same-shape inputs"
    orig_shape = x.shape
    n = x.size
    if n == 0:
        return jnp.right_shift(x, y)

    xf = x.reshape(-1)
    yf = y.reshape(-1)

    n_main = (n // LANE) * LANE
    if n_main == 0:
        # Fewer than 128 elements total: kernel launch not worthwhile.
        return jnp.right_shift(x, y)

    # Lane-dense slab factorization of the kernel-covered prefix.
    width = next(w for w in _WIDTHS if n_main % w == 0)
    rows = n_main // width

    itemsize = jnp.dtype(x.dtype).itemsize
    target_bytes, vmem_limit = _vmem_budget()
    block_rows = _pick_block_rows(rows, width, itemsize, target_bytes)
    grid = (pl.cdiv(rows, block_rows),)

    x2 = xf[:n_main].reshape(rows, width)
    y2 = yf[:n_main].reshape(rows, width)

    out2 = pl.pallas_call(
        _right_shift_kernel,
        out_shape=jax.ShapeDtypeStruct((rows, width), x.dtype),
        grid_spec=pltpu.PrefetchScalarGridSpec(
            num_scalar_prefetch=0,
            grid=grid,
            in_specs=[
                pl.BlockSpec((block_rows, width), lambda i: (i, 0)),
                pl.BlockSpec((block_rows, width), lambda i: (i, 0)),
            ],
            out_specs=pl.BlockSpec((block_rows, width), lambda i: (i, 0)),
        ),
        compiler_params=pltpu.CompilerParams(
            dimension_semantics=("parallel",),
            vmem_limit_bytes=vmem_limit,
        ),
    )(x2, y2)

    if n_main == n:
        return out2.reshape(orig_shape)

    # Ragged tail (< 128 elements): compute with plain jnp instead of padding
    # full copies of both inputs (this kernel's entire cost is HBM traffic).
    tail = jnp.right_shift(xf[n_main:], yf[n_main:])
    return jnp.concatenate([out2.reshape(-1), tail]).reshape(orig_shape)


if __name__ == "__main__":
    key = jax.random.PRNGKey(0)
    kx, ky, kx2, ky2 = jax.random.split(key, 4)

    # Small shape consistent with the module's elementwise forward.
    shape = (2, 4, 16, 16)
    x = jax.random.randint(kx, shape, minval=-1000, maxval=1000, dtype=jnp.int32)
    y = jax.random.randint(ky, shape, minval=0, maxval=8, dtype=jnp.int32)

    out = bitwise_right_shift(x, y)
    jax.block_until_ready(out)

    ref = jnp.right_shift(x, y)
    assert out.shape == shape and out.dtype == jnp.int32
    assert bool(jnp.all(out == ref))

    # Secondary sanity check exercising a multi-step grid (forced >= 2 steps).
    shape2 = (8, 8, 128, 128)
    x2 = jax.random.randint(kx2, shape2, minval=-10000, maxval=10000, dtype=jnp.int32)
    y2 = jax.random.randint(ky2, shape2, minval=0, maxval=16, dtype=jnp.int32)
    out2 = bitwise_right_shift(x2, y2)
    jax.block_until_ready(out2)
    assert bool(jnp.all(out2 == jnp.right_shift(x2, y2)))

    print("KERNEL_OK")
</pallas_src>

<mosaic_0001>
module attributes {stable_mosaic.version = 11 : i64} {
  func.func @_right_shift_kernel(%arg0: i32, %arg1: memref<1x2048xi32, #tpu.memory_space<vmem>>, %arg2: memref<1x2048xi32, #tpu.memory_space<vmem>>, %arg3: memref<1x2048xi32, #tpu.memory_space<vmem>>) attributes {dimension_semantics = [#tpu.dimension_semantics<parallel>], iteration_bounds = array<i64: 1>, scalar_prefetch = 0 : i64, scratch_operands = 0 : i64, tpu.core_type = #tpu.core_type<tc>, window_params = [{transform_indices = @transform_0, window_bounds = array<i64: 1, 2048>}, {transform_indices = @transform_1, window_bounds = array<i64: 1, 2048>}, {transform_indices = @transform_2, window_bounds = array<i64: 1, 2048>}]} {
    %c0 = arith.constant 0 : index
    %c0_0 = arith.constant 0 : index
    %0 = vector.load %arg1[%c0, %c0_0] : memref<1x2048xi32, #tpu.memory_space<vmem>>, vector<1x2048xi32>
    %c0_1 = arith.constant 0 : index
    %c0_2 = arith.constant 0 : index
    %1 = vector.load %arg2[%c0_1, %c0_2] : memref<1x2048xi32, #tpu.memory_space<vmem>>, vector<1x2048xi32>
    %2 = arith.shrsi %0, %1 : vector<1x2048xi32>
    %c0_3 = arith.constant 0 : index
    %c0_4 = arith.constant 0 : index
    %3 = vector.load %arg3[%c0_3, %c0_4] : memref<1x2048xi32, #tpu.memory_space<vmem>>, vector<1x2048xi32>
    tpu.vector_store %arg3[%c0_3, %c0_4], %2 {strides = array<i32>} : memref<1x2048xi32, #tpu.memory_space<vmem>>, vector<1x2048xi32>,
    return
  }
  func.func @transform_0(%arg0: i32) -> (i32, i32) {
    %c0_i32 = arith.constant 0 : i32
    %c0_i32_0 = arith.constant 0 : i32
    return %arg0, %c0_i32 : i32, i32
  }
  func.func @transform_1(%arg0: i32) -> (i32, i32) {
    %c0_i32 = arith.constant 0 : i32
    %c0_i32_0 = arith.constant 0 : i32
    return %arg0, %c0_i32 : i32, i32
  }
  func.func @transform_2(%arg0: i32) -> (i32, i32) {
    %c0_i32 = arith.constant 0 : i32
    %c0_i32_0 = arith.constant 0 : i32
    return %arg0, %c0_i32 : i32, i32
  }
}

</mosaic_0001>

<llo_original>
// kernel: tpu_custom_call.1
$region0: #{tpu_custom_call.1}
  #allocation0 [shape = 'u32[]', space=smem, size = 0x4, offset = 0x4, fixed_abs, tag = 'smem constant byte address 0x4 - core index']
  #allocation1 [shape = 'u32[72,128]{1,0:T(1,128)}', space=vmem, size = 0x9000, scoped, tag = 'internal scratch']
  %s0 = inlined_call_operand.hbm [shape: s32[1,2048], index: 0, kind: input, shape index: {}]
  %s1 = inlined_call_operand.hbm [shape: s32[1,2048], index: 1, kind: input, shape index: {}]
  %s2 = inlined_call_operand.hbm [shape: s32[1,2048], index: 2, kind: output, shape index: {}]
  %s3 = sld [smem:[#allocation0]]
  $region26: #{tpu_custom_call.1} parent=0
    _
  %s5 = ssub.s32 1, %s3
  %s6 = scalar_select 0, %s5, %s3
  $region1: #{tpu_custom_call.1} parent=0
    #allocation2 [shape = 'u8[8192]{0}', space=vmem, size = 0x2000, scoped, tag = 'input window, operand 0, single buffered']
    #allocation3 [shape = 's32[1]{0}', space=sflag, size = 0x4, scoped, tag = 'scoped memory for tpu_custom_call.1']
    #allocation4 [shape = 's32[1]{0}', space=sflag, size = 0x4, scoped, tag = 'scoped memory for tpu_custom_call.1']
    #allocation5 [shape = 'u8[8192]{0}', space=vmem, size = 0x2000, scoped, tag = 'input window, operand 1, single buffered']
    #allocation6 [shape = 's32[1]{0}', space=sflag, size = 0x4, scoped, tag = 'scoped memory for tpu_custom_call.1']
    #allocation7 [shape = 'u8[8192]{0}', space=vmem, size = 0x2000, scoped, tag = 'output window, operand 0, single buffered']
    %7 = vsyncpa [#allocation3], 0
    %8 = vsyncpa [#allocation6], 0
    %9 = vsyncpa [#allocation4], 0
    // Predicated region
    $region2: #{tpu_custom_call.1} parent=1 // pred_check
      _
    $region3: #{tpu_custom_call.1} parent=1 // pred_check_branch
      %11 = sbr.rel (0) target = $region5
    $region4: #{tpu_custom_call.1} parent=1 // pred_region
      %13 = vsyncadd [#allocation3], 0
      %s15 = sshll.u32 %s0, 4
      %s16 = int_to_ptr.hbm [resolvable:$true] %s15
      %s17 = sshll.u32 [#allocation2], 4
      %s18 = int_to_ptr.vmem [resolvable:$true] %s17
      %20 = dma.hbm_to_vmem [thread:$0]  %s16, 256, %s18, [#allocation3]
    $region5: #{tpu_custom_call.1} parent=1 // pred_fallthru
      _
    // Predicated region
    $region6: #{tpu_custom_call.1} parent=1 // pred_check
      _
    $region7: #{tpu_custom_call.1} parent=1 // pred_check_branch
      %22 = sbr.rel (0) target = $region9
    $region8: #{tpu_custom_call.1} parent=1 // pred_region
      %24 = vsyncadd [#allocation6], 0
      %s26 = sshll.u32 %s1, 4
      %s27 = int_to_ptr.hbm [resolvable:$true] %s26
      %s28 = sshll.u32 [#allocation5], 4
      %s29 = int_to_ptr.vmem [resolvable:$true] %s28
      %31 = dma.hbm_to_vmem [thread:$0]  %s27, 256, %s29, [#allocation6]
    $region9: #{tpu_custom_call.1} parent=1 // pred_fallthru
      _
    // Predicated region
    $region10: #{tpu_custom_call.1} parent=1 // pred_check
      _
    $region11: #{tpu_custom_call.1} parent=1 // pred_check_branch
      %33 = sbr.rel (0) target = $region13
    $region12: #{tpu_custom_call.1} parent=1 // pred_region
      %35 = dma.done [#allocation3], 256
    $region13: #{tpu_custom_call.1} parent=1 // pred_fallthru
      _
    // Predicated region
    $region14: #{tpu_custom_call.1} parent=1 // pred_check
      _
    $region15: #{tpu_custom_call.1} parent=1 // pred_check_branch
      %37 = sbr.rel (0) target = $region17
    $region16: #{tpu_custom_call.1} parent=1 // pred_region
      %39 = dma.done [#allocation6], 256
    $region17: #{tpu_custom_call.1} parent=1 // pred_fallthru
      _
    %v40 = vld [vmem:[#allocation2] sm:$0xff]
    %v41 = vld [vmem:[#allocation2 + $0x8] sm:$0xff]
    %v42 = vld [vmem:[#allocation5] sm:$0xff]
    %v43 = vld [vmem:[#allocation5 + $0x8] sm:$0xff]
    %v44 = vshra.s32 %v40, %v42
    %v45 = vshra.s32 %v41, %v43
    %46 = vst [vmem:[#allocation7] sm:$0xff] %v44
    %47 = vst [vmem:[#allocation7 + $0x8] sm:$0xff] %v45
    // Predicated region
    $region18: #{tpu_custom_call.1} parent=1 // pred_check
      _
    $region19: #{tpu_custom_call.1} parent=1 // pred_check_branch
      %49 = sbr.rel (0) target = $region21
    $region20: #{tpu_custom_call.1} parent=1 // pred_region
      %51 = vsyncadd [#allocation4], 0
      %s53 = sshll.u32 [#allocation7], 4
      %s54 = int_to_ptr.vmem [resolvable:$true] %s53
      %s55 = sshll.u32 %s2, 4
      %s56 = int_to_ptr.hbm [resolvable:$true] %s55
      %58 = dma.vmem_to_hbm [thread:$0]  %s54, 256, %s56, [#allocation4]
    $region21: #{tpu_custom_call.1} parent=1 // pred_fallthru
      _
    // Predicated region
    $region22: #{tpu_custom_call.1} parent=1 // pred_check
      _
    $region23: #{tpu_custom_call.1} parent=1 // pred_check_branch
      %60 = sbr.rel (0) target = $region25
    $region24: #{tpu_custom_call.1} parent=1 // pred_region
      %62 = dma.done [#allocation4], 256
    $region25: #{tpu_custom_call.1} parent=1 // pred_fallthru
      _
    %63 = vsyncpa [#allocation3], 1
    %64 = vsyncpa [#allocation6], 1
    %65 = vsyncpa [#allocation4], 1

</llo_original>
